<compile_context>
chip_gen: v7x
topology: tpu7x:2x2x1
jax: 0.10.0
libtpu: 0.0.40
codegen_flags: <defaults>
</compile_context>

<pallas_src>
import functools
import math

import numpy as np
import jax
import jax.numpy as jnp
from jax import lax
from jax.experimental import pallas as pl
from jax.experimental.pallas import tpu as pltpu


def _cdiv(a, b):
    return -(-a // b)


_ROLL_IS_JNP = None


def _roll_matches_jnp():
    """One-time probe: does pltpu.roll follow jnp.roll (positive shift -> higher
    lane indices)?  Used only to pick static rotation amounts for the in-kernel
    window build; the sublane parity-sum rotations are direction-insensitive."""
    global _ROLL_IS_JNP
    if _ROLL_IS_JNP is None:
        def _probe(x_ref, o_ref):
            o_ref[...] = pltpu.roll(x_ref[...], 1, axis=1)

        x = jnp.tile(jnp.arange(128, dtype=jnp.float32)[None, :], (8, 1))
        out = pl.pallas_call(
            _probe, out_shape=jax.ShapeDtypeStruct((8, 128), jnp.float32))(x)
        _ROLL_IS_JNP = bool(np.asarray(out)[0, 0] == 127.0)
    return _ROLL_IS_JNP


def _cma_kernel(R, lr0, step, L, n_groups, group_size, k_tiles, n_iter, roll_jnp,
                ybr_ref, ybi_ref, g0_ref,          # in : (T,8,128), (T,8,128), (8,128)
                ore_ref, oim_ref, taps_ref,        # out: (8,C), (8,C), (8,128)
                lr_scr):                           # scratch: SMEM (1,) f32
    c = pl.program_id(0)
    C = ore_ref.shape[1]

    @pl.when(c == 0)
    def _init():
        taps_ref[...] = g0_ref[...]                # carried tap state lives in taps_ref
        lr_scr[0] = jnp.float32(lr0)

    # ---- per-chunk learning-rate schedule (C <= 20000 => at most one halving) ----
    g_start = c * C
    rem = lax.rem(g_start, 20000)
    j_split = jnp.where(g_start == 0, C,
                        jnp.where(rem == 0, 0, 20000 - rem)).astype(jnp.int32)
    lr_a = lr_scr[0]
    lr_b = lr_a * jnp.float32(0.5)
    two_lr_a = jnp.float32(2.0) * lr_a
    two_lr_b = jnp.float32(2.0) * lr_b
    zero_lr = jnp.float32(0.0)
    n_valid = jnp.int32(n_iter) - g_start          # padded tail symbols: update masked to 0
    R_f = jnp.float32(R)

    # loop-invariant lane mask (window length L < 128)
    lane = lax.broadcasted_iota(jnp.int32, (8, 128), 1)
    lmask = (lane < L).astype(jnp.float32)

    def shl(x, k):
        # lane shift-left by k (circular): result[:, l] = x[:, (l + k) % 128]
        amt = ((-k) % 128) if roll_jnp else (k % 128)
        if amt == 0:
            return x
        return pltpu.roll(x, amt, axis=1)

    def group_body(g, G):
        base = g * k_tiles
        # raw sample tiles spanning this group (loaded once, reused by all symbols)
        tr = [ybr_ref[base + t] for t in range(k_tiles + 1)]
        ti = [ybi_ref[base + t] for t in range(k_tiles + 1)]
        j0 = g * group_size

        # fully-unrolled symbol loop: all lane offsets are compile-time constants
        for s in range(group_size):
            off = s * step
            t0, lo = off // 128, off % 128
            if lo + L <= 128:                       # window inside a single lane tile
                wre = shl(tr[t0], lo) * lmask
                wim = shl(ti[t0], lo) * lmask
            else:                                   # window crosses into the next tile
                cross = lane < (128 - lo)
                wre = jnp.where(cross, shl(tr[t0], lo), shl(tr[t0 + 1], lo - 128)) * lmask
                wim = jnp.where(cross, shl(ti[t0], lo), shl(ti[t0 + 1], lo - 128)) * lmask

            # per-row products; signs for the "re" path are baked into the plane
            pr = G * wre
            pi = G * wim
            # parity (even/odd sublane) sums — direction-insensitive sublane roll-adds
            pr = pr + pltpu.roll(pr, 4, axis=0)
            pr = pr + pltpu.roll(pr, 2, axis=0)
            pi = pi + pltpu.roll(pi, 4, axis=0)
            pi = pi + pltpu.roll(pi, 2, axis=0)
            s_re = jnp.sum(pr, axis=1, keepdims=True)   # (8,1): even rows = out0_re, odd = out1_re
            s_im = jnp.sum(pi, axis=1, keepdims=True)   # (8,1): even rows = out0_im, odd = out1_im

            j = j0 + s
            # lane-dense per-symbol result columns (wrapper just slices rows 0/1)
            ore_ref[:, pl.ds(j, 1)] = s_re
            oim_ref[:, pl.ds(j, 1)] = s_im

            # scalar-unit learning rate / validity select (hoisted constants)
            two_lr = jnp.where(j >= j_split, two_lr_b, two_lr_a)
            two_lr = jnp.where(j < n_valid, two_lr, zero_lr)

            # CMA error and tap update, entirely in (8,1)/(8,128) element-wise form
            F = two_lr * (R_f - (s_re * s_re + s_im * s_im))
            G = G + (F * s_re) * wre + (F * s_im) * wim
        return G

    g_fin = lax.fori_loop(0, n_groups, group_body, taps_ref[...])
    taps_ref[...] = g_fin
    lr_scr[0] = jnp.where(j_split < C, lr_b, lr_a)


def butterfly_init_taps(filter_length):
    """Deterministic Butterfly2x2 init used by CMA.__init__ (identity center taps)."""
    taps = np.zeros((4, filter_length), dtype=np.complex64)
    taps[0, filter_length // 2] = 1.0
    taps[2, filter_length // 2] = 1.0
    return taps


def cma_forward(y, R, sps, lr, taps, block_size=1):
    """Pallas implementation of CMA.forward. Returns (out, e, final_taps)."""
    taps = np.asarray(taps, dtype=np.complex64)
    L = int(taps.shape[1])
    assert L <= 128, "filter_length must fit a single lane tile"
    num_samp = int(y.shape[1])
    eq_offset = (L - 1) // 2
    sps = int(sps)
    block_size = int(block_size)
    step = sps * block_size
    n_out = (num_samp - L) // sps
    n_iter = len(range(eq_offset, num_samp - 1 - eq_offset * 2, step))
    assert 0 < n_iter <= n_out

    # group of symbols whose window offsets inside a 128-aligned slab are static
    group_size = 128 // math.gcd(step, 128)
    k_tiles = (group_size * step) // 128

    # chunk size (symbols per grid step): multiple of 128, capped at 1024
    C = min(1024, 128 * _cdiv(n_iter, 128))
    assert C % group_size == 0
    assert C <= 20000, "lr schedule assumes at most one halving per chunk"
    n_chunks = _cdiv(n_iter, C)
    n_pad = n_chunks * C
    n_groups = C // group_size
    t_body = (C * step) // 128                     # lane tiles consumed per chunk
    T = t_body + 1                                 # + one halo tile

    # torch negative-index wraparound: y[:, j] valid for j in [-L, num_samp)
    y = jnp.asarray(y)
    y_ext = jnp.concatenate([y[:, num_samp - L:], y], axis=1)        # (2, num_samp+L)
    # sample plane: position p  <->  y_ext column eq_offset + p (window of symbol i
    # covers positions i*step .. i*step+L-1)
    plane_len = (n_chunks * t_body + 1) * 128
    src = y_ext[:, eq_offset:]
    pad = plane_len - src.shape[1]
    if pad > 0:
        src = jnp.pad(src, ((0, 0), (0, pad)))
    else:
        src = src[:, :plane_len]
    y0r = jnp.real(src[0]).astype(jnp.float32)
    y0i = jnp.imag(src[0]).astype(jnp.float32)
    y1r = jnp.real(src[1]).astype(jnp.float32)
    y1i = jnp.imag(src[1]).astype(jnp.float32)

    # Parity-interleaved row order (even sublanes -> output 0, odd -> output 1):
    #   G rows   : [g0r, g2r, g0i, g2i, g1r, g3r, g1i, g3i]   (flipped taps)
    #   re plane : [y0r, y1r,-y0i,-y1i, y1r, y0r,-y1i,-y0i]   (sign pattern baked in)
    #   im plane : [y0i, y1i, y0r, y1r, y1i, y0i, y1r, y0r]
    plane_re = jnp.stack([y0r, y1r, -y0i, -y1i, y1r, y0r, -y1i, -y0i], axis=0)
    plane_im = jnp.stack([y0i, y1i, y0r, y1r, y1i, y0i, y1r, y0r], axis=0)

    n_tiles = plane_len // 128
    tiles_re = plane_re.reshape(8, n_tiles, 128).transpose(1, 0, 2)   # (n_tiles, 8, 128)
    tiles_im = plane_im.reshape(8, n_tiles, 128).transpose(1, 0, 2)
    tile_idx = np.arange(n_chunks)[:, None] * t_body + np.arange(T)[None, :]
    ybr = tiles_re[tile_idx]                        # (n_chunks, T, 8, 128) — raw samples + halo
    ybi = tiles_im[tile_idx]

    # initial flipped taps in the parity row order, lane padded
    gflip = np.flip(taps, axis=1)                   # (4, L) complex: g0,g1,g2,g3 flipped
    g0 = np.zeros((8, 128), dtype=np.float32)
    g0[0, :L] = gflip[0].real; g0[2, :L] = gflip[0].imag
    g0[4, :L] = gflip[1].real; g0[6, :L] = gflip[1].imag
    g0[1, :L] = gflip[2].real; g0[3, :L] = gflip[2].imag
    g0[5, :L] = gflip[3].real; g0[7, :L] = gflip[3].imag
    g0 = jnp.asarray(g0)

    kernel = functools.partial(
        _cma_kernel, float(R), float(lr), step, L, n_groups, group_size, k_tiles,
        n_iter, _roll_matches_jnp())

    grid_spec = pltpu.PrefetchScalarGridSpec(
        num_scalar_prefetch=0,
        grid=(n_chunks,),
        in_specs=[
            pl.BlockSpec((None, T, 8, 128), lambda c: (c, 0, 0, 0)),   # raw "re" plane
            pl.BlockSpec((None, T, 8, 128), lambda c: (c, 0, 0, 0)),   # raw "im" plane
            pl.BlockSpec((8, 128), lambda c: (0, 0)),                  # initial taps
        ],
        out_specs=(
            pl.BlockSpec((None, 8, C), lambda c: (c, 0, 0)),           # out re columns
            pl.BlockSpec((None, 8, C), lambda c: (c, 0, 0)),           # out im columns
            pl.BlockSpec((8, 128), lambda c: (0, 0)),                  # carried / final taps
        ),
        scratch_shapes=[
            pltpu.SMEM((1,), jnp.float32),                             # carried learning rate
        ],
    )

    ore, oim, taps_f = pl.pallas_call(
        kernel,
        out_shape=(jax.ShapeDtypeStruct((n_chunks, 8, C), jnp.float32),
                   jax.ShapeDtypeStruct((n_chunks, 8, C), jnp.float32),
                   jax.ShapeDtypeStruct((8, 128), jnp.float32)),
        grid_spec=grid_spec,
        compiler_params=pltpu.CompilerParams(
            dimension_semantics=("arbitrary",),
            vmem_limit_bytes=32 << 20),
    )(ybr, ybi, g0)

    # rows 0/1 of the stored columns are out0/out1 directly
    ore_all = jnp.transpose(ore, (1, 0, 2)).reshape(8, n_pad)[:, :n_iter]
    oim_all = jnp.transpose(oim, (1, 0, 2)).reshape(8, n_pad)[:, :n_iter]
    out0_re, out1_re = ore_all[0], ore_all[1]
    out0_im, out1_im = oim_all[0], oim_all[1]
    e0 = R - (out0_re * out0_re + out0_im * out0_im)
    e1 = R - (out1_re * out1_re + out1_im * out1_im)

    pad_n = n_out - n_iter
    out = jnp.stack([out0_re + 1j * out0_im, out1_re + 1j * out1_im], axis=0)
    out = jnp.pad(out, ((0, 0), (0, pad_n))).astype(jnp.complex64)
    e = jnp.stack([e0, e1], axis=0)
    e = jnp.pad(e, ((0, 0), (0, pad_n))).astype(jnp.float32)

    # final taps: undo parity row order, un-flip
    t0 = taps_f[0, :L] + 1j * taps_f[2, :L]
    t1 = taps_f[4, :L] + 1j * taps_f[6, :L]
    t2 = taps_f[1, :L] + 1j * taps_f[3, :L]
    t3 = taps_f[5, :L] + 1j * taps_f[7, :L]
    taps_final = jnp.flip(jnp.stack([t0, t1, t2, t3], axis=0), axis=1).astype(jnp.complex64)
    return out, e, taps_final


def cma_reference_numpy(y, R, sps, lr, taps, block_size=1):
    """Pure numpy transcription of the torch forward (float64 accumulation)."""
    y = np.asarray(y, dtype=np.complex128)
    taps = np.asarray(taps, dtype=np.complex128).copy()
    L = taps.shape[1]
    num_samp = y.shape[1]
    eq_offset = (L - 1) // 2
    n_out = (num_samp - L) // sps
    out = np.zeros((2, n_out), dtype=np.complex128)
    e = np.zeros((2, n_out), dtype=np.float64)
    for i, k in enumerate(range(eq_offset, num_samp - 1 - eq_offset * 2, sps * block_size)):
        if i % 20000 == 0 and i != 0:
            lr = lr / 2.0
        in_index = np.arange(k - L, k)          # negative indices wrap (torch semantics)
        y0 = y[0, in_index]; y1 = y[1, in_index]
        o0 = np.sum(y0 * taps[0, ::-1]) + np.sum(y1 * taps[1, ::-1])   # "valid" convolution
        o1 = np.sum(y1 * taps[2, ::-1]) + np.sum(y0 * taps[3, ::-1])
        out[0, i] = o0; out[1, i] = o1
        e[0, i] = R - np.abs(o0) ** 2
        e[1, i] = R - np.abs(o1) ** 2
        upd = np.stack([e[0, i] * o0 * np.conj(y0), e[0, i] * o0 * np.conj(y1),
                        e[1, i] * o1 * np.conj(y1), e[1, i] * o1 * np.conj(y0)], axis=0)
        taps = taps + 2 * lr * upd[:, ::-1]
    return out, e, taps


if __name__ == "__main__":
    # Small, deterministic example consistent with the module's forward:
    # dual-polarization complex signal, 2 samples/symbol, 31-tap butterfly filter.
    num_samp = 256
    filter_length = 31
    sps = 2
    R = 1.0
    lr = 1e-3

    key = jax.random.PRNGKey(0)
    k_re, k_im = jax.random.split(key)
    y = ((jax.random.normal(k_re, (2, num_samp), dtype=jnp.float32)
          + 1j * jax.random.normal(k_im, (2, num_samp), dtype=jnp.float32))
         / jnp.sqrt(2.0)).astype(jnp.complex64)

    taps0 = butterfly_init_taps(filter_length)

    out, e, taps_final = cma_forward(y, R, sps, lr, taps0, block_size=1)
    out = jax.block_until_ready(out)
    e = jax.block_until_ready(e)
    taps_final = jax.block_until_ready(taps_final)

    out_ref, e_ref, taps_ref_np = cma_reference_numpy(np.asarray(y), R, sps, lr, taps0)
    np.testing.assert_allclose(np.asarray(out), out_ref, rtol=2e-3, atol=2e-3)
    np.testing.assert_allclose(np.asarray(e), e_ref, rtol=2e-3, atol=2e-3)
    np.testing.assert_allclose(np.asarray(taps_final), taps_ref_np, rtol=2e-3, atol=2e-3)

    print("KERNEL_OK")
</pallas_src>

<mosaic_0001>
module attributes {stable_mosaic.version = 11 : i64} {
  func.func @_probe(%arg0: memref<8x128xf32, #tpu.memory_space<vmem>>, %arg1: memref<8x128xf32, #tpu.memory_space<vmem>>) attributes {dimension_semantics = [], scalar_prefetch = 0 : i64, scratch_operands = 0 : i64, tpu.core_type = #tpu.core_type<tc>} {
    %c0 = arith.constant 0 : index
    %c0_0 = arith.constant 0 : index
    %0 = vector.load %arg0[%c0, %c0_0] : memref<8x128xf32, #tpu.memory_space<vmem>>, vector<8x128xf32>
    %c1_i32 = arith.constant 1 : i32
    %1 = tpu.dynamic_rotate %0 by %c1_i32 dim 1 : vector<8x128xf32>, i32 -> vector<8x128xf32>
    %c0_1 = arith.constant 0 : index
    %c0_2 = arith.constant 0 : index
    %2 = vector.load %arg1[%c0_1, %c0_2] : memref<8x128xf32, #tpu.memory_space<vmem>>, vector<8x128xf32>
    tpu.vector_store %arg1[%c0_1, %c0_2], %1 {strides = array<i32>} : memref<8x128xf32, #tpu.memory_space<vmem>>, vector<8x128xf32>,
    return
  }
}

</mosaic_0001>

<llo_original>
// kernel: tpu_custom_call.1
$region0: #{tpu_custom_call.1}
  #allocation0 [shape = 'u32[]', space=smem, size = 0x4, offset = 0x4, fixed_abs, tag = 'smem constant byte address 0x4 - core index']
  #allocation1 [shape = 'u32[144,128]{1,0:T(1,128)}', space=vmem, size = 0x12000, scoped, tag = 'internal scratch']
  %s0 = inlined_call_operand.hbm [shape: f32[8,128], index: 0, kind: input, shape index: {}]
  %s1 = inlined_call_operand.hbm [shape: f32[8,128], index: 1, kind: output, shape index: {}]
  %s2 = sld [smem:[#allocation0]]
  $region18: #{tpu_custom_call.1} parent=0
    _
  %s4 = ssub.s32 1, %s2
  %s5 = scalar_select 0, %s4, %s2
  $region1: #{tpu_custom_call.1} parent=0
    #allocation2 [shape = 'u8[4096]{0}', space=vmem, size = 0x1000, scoped, tag = 'input window, operand 0, single buffered']
    #allocation3 [shape = 's32[1]{0}', space=sflag, size = 0x4, scoped, tag = 'scoped memory for tpu_custom_call.1']
    #allocation4 [shape = 's32[1]{0}', space=sflag, size = 0x4, scoped, tag = 'scoped memory for tpu_custom_call.1']
    #allocation5 [shape = 'u8[4096]{0}', space=vmem, size = 0x1000, scoped, tag = 'output window, operand 0, single buffered']
    %6 = vsyncpa [#allocation3], 0
    %7 = vsyncpa [#allocation4], 0
    // Predicated region
    $region2: #{tpu_custom_call.1} parent=1 // pred_check
      _
    $region3: #{tpu_custom_call.1} parent=1 // pred_check_branch
      %9 = sbr.rel (0) target = $region5
    $region4: #{tpu_custom_call.1} parent=1 // pred_region
      %s11 = ssub.s32 128, 128
      %12 = vsyncadd [#allocation3], %s11
      %s14 = sshll.u32 [#allocation2], 4
      %s15 = int_to_ptr.vmem [resolvable:$true] %s14
      %17 = dma.hbm_to_vmem [thread:$0]  %s0, 128, %s15, [#allocation3]
    $region5: #{tpu_custom_call.1} parent=1 // pred_fallthru
      _
    // Predicated region
    $region6: #{tpu_custom_call.1} parent=1 // pred_check
      _
    $region7: #{tpu_custom_call.1} parent=1 // pred_check_branch
      %19 = sbr.rel (0) target = $region9
    $region8: #{tpu_custom_call.1} parent=1 // pred_region
      %20 = dma.done [#allocation3], 128
    $region9: #{tpu_custom_call.1} parent=1 // pred_fallthru
      _
    %v21 = vld [vmem:[#allocation2] sm:$0xff]
    %22 = vrot.lane.b32.xlu0 %v21, 1
    %v23 = vpop.permute.xlu0 %22
    %24 = vst [vmem:[#allocation5] sm:$0xff] %v23
    // Predicated region
    $region10: #{tpu_custom_call.1} parent=1 // pred_check
      _
    $region11: #{tpu_custom_call.1} parent=1 // pred_check_branch
      %26 = sbr.rel (0) target = $region13
    $region12: #{tpu_custom_call.1} parent=1 // pred_region
      %s28 = ssub.s32 128, 128
      %29 = vsyncadd [#allocation4], %s28
      %s31 = sshll.u32 [#allocation5], 4
      %s32 = int_to_ptr.vmem [resolvable:$true] %s31
      %34 = dma.vmem_to_hbm [thread:$0]  %s32, 128, %s1, [#allocation4]
    $region13: #{tpu_custom_call.1} parent=1 // pred_fallthru
      _
    // Predicated region
    $region14: #{tpu_custom_call.1} parent=1 // pred_check
      _
    $region15: #{tpu_custom_call.1} parent=1 // pred_check_branch
      %36 = sbr.rel (0) target = $region17
    $region16: #{tpu_custom_call.1} parent=1 // pred_region
      %37 = dma.done [#allocation4], 128
    $region17: #{tpu_custom_call.1} parent=1 // pred_fallthru
      _
    %38 = vsyncpa [#allocation3], 1
    %39 = vsyncpa [#allocation4], 1

</llo_original>
